<compile_context>
chip_gen: v5e
topology: v5e:2x2
jax: 0.10.0
libtpu: 0.0.40
codegen_flags: <defaults>
</compile_context>

<pallas_src>
import functools

import jax
import jax.numpy as jnp
from jax.experimental import pallas as pl
from jax.experimental.pallas import tpu as pltpu


# ---------------------------------------------------------------------------
# Pass 1: grouped std statistics -> per-channel mean std (M, 1, C)
# ---------------------------------------------------------------------------
def _stat_kernel(x_ref, stat_ref, acc_ref, *, G, eps, inv_hw):
    """x_ref: (G, 1, C, t) block.  stat_ref: (1, 1, C) f32.  acc_ref: (1, C) f32."""
    h = pl.program_id(1)

    @pl.when(h == 0)
    def _init():
        acc_ref[...] = jnp.zeros_like(acc_ref)

    _, _, C, t = x_ref.shape

    # Two-pass mean/variance over the G group members (matches the reference
    # numerics).  G is a small static constant, so the loops fully unroll with
    # static first-axis indices and only one (1, C, t) f32 slice plus the
    # running accumulator are live at a time.
    gsum = jnp.zeros((1, C, t), jnp.float32)
    for g in range(G):
        gsum = gsum + x_ref[g].astype(jnp.float32)
    gmean = gsum * (1.0 / G)

    var = jnp.zeros((1, C, t), jnp.float32)
    for g in range(G):
        d = x_ref[g].astype(jnp.float32) - gmean
        var = var + d * d
    std = jnp.sqrt(var * (1.0 / G) + eps)        # (1, C, t) per-position group std

    # Partial spatial (lane) reduction for this HW tile into the lane-dense
    # (1, C) accumulator (XLU reduce; cheap, off the VALU slots).
    acc_ref[...] += jnp.sum(std, axis=-1)

    @pl.when(h == pl.num_programs(1) - 1)
    def _finalize():
        stat_ref[...] = (acc_ref[...] * inv_hw).reshape(1, 1, C)


# ---------------------------------------------------------------------------
# Pass 2: pass-through copy + broadcast-append of the stat channels
# ---------------------------------------------------------------------------
def _concat_kernel(stat_ref, x_ref, o_ref):
    """stat_ref: (N, nC).  x_ref: (N, C, t).  o_ref: (N, C + nC, t)."""
    C = x_ref.shape[1]
    N, Cout, t = o_ref.shape
    o_ref[:, :C, :] = x_ref[...]
    o_ref[:, C:, :] = jnp.broadcast_to(stat_ref[...][:, :, None], (N, Cout - C, t))


# ---------------------------------------------------------------------------
# Tiling / VMEM helpers
# ---------------------------------------------------------------------------
def _pick_hw_tile(hw, bytes_per_lane, target_block_bytes, max_lanes=2048):
    """Largest multiple-of-128 divisor of `hw` within the lane/byte budget."""
    if hw <= 128 or hw % 128 != 0:
        return hw                                   # single full tile fallback
    lane_cap = max(128, min(max_lanes, target_block_bytes // max(bytes_per_lane, 1)))
    lane_cap = min(hw, (lane_cap // 128) * 128)
    if lane_cap >= hw:
        return hw
    best = 128
    t = 128
    while t <= lane_cap:
        if hw % t == 0:
            best = t
        t += 128
    return best


def _vmem_limit(*buffer_bytes):
    """Scoped-VMEM limit: double-buffered blocks + headroom, clamped to 32..48 MiB."""
    need = 2 * sum(int(b) for b in buffer_bytes) + (4 << 20)
    return int(min(48 << 20, max(32 << 20, need)))


# ---------------------------------------------------------------------------
# Public wrapper (matches MiniBatchSTDLayer.forward, NCHW in / NCHW out)
# ---------------------------------------------------------------------------
def minibatch_std_layer(x, *, groups, new_channels, eps):
    if groups <= 1 or new_channels < 1:
        return x
    N, C, H, W = x.shape
    G = min(groups, N)
    nC = new_channels
    assert N % G == 0, "batch must be divisible by (clamped) groups"
    assert C % nC == 0, "channels must be divisible by new_channels"
    M = N // G
    c_fold = C // nC
    HW = H * W
    itemsize = jnp.dtype(x.dtype).itemsize

    # ---- pass 1: grouped std statistics -> per-channel mean std (M, C) ----
    t1 = _pick_hw_tile(HW, bytes_per_lane=G * C * itemsize + 3 * C * 4,
                       target_block_bytes=2 << 20)
    in_block1 = G * C * t1 * itemsize
    f32_tmp1 = 3 * C * t1 * 4                       # streaming f32 temporaries (approx)
    x4 = x.reshape(G, M, C, HW)

    per_chan = pl.pallas_call(
        functools.partial(_stat_kernel, G=G, eps=float(eps), inv_hw=1.0 / HW),
        grid=(M, HW // t1),
        in_specs=[pl.BlockSpec((G, 1, C, t1), lambda m, h: (0, m, 0, h))],
        out_specs=pl.BlockSpec((1, 1, C), lambda m, h: (m, 0, 0)),
        out_shape=jax.ShapeDtypeStruct((M, 1, C), jnp.float32),
        scratch_shapes=[pltpu.VMEM((1, C), jnp.float32)],
        compiler_params=pltpu.CompilerParams(
            dimension_semantics=("parallel", "arbitrary"),
            vmem_limit_bytes=_vmem_limit(in_block1, f32_tmp1)),
        cost_estimate=pl.CostEstimate(
            flops=int(5 * N * C * HW),
            transcendentals=int(M * C * HW),
            bytes_accessed=int(N * C * HW * itemsize + M * C * 4)),
    )(x4)

    # Tiny glue on (M, C): fold channels to nC and tile over the batch.  These
    # are negligible XLA ops and keep relayout-heavy reshapes out of the kernel.
    stat = jnp.mean(per_chan.reshape(M, nC, c_fold), axis=-1)        # (M, nC)
    stat_full = jnp.tile(stat, (G, 1)).astype(x.dtype)               # (N, nC); row n uses stat[n % M]

    # ---- pass 2: pass-through + broadcast-append stat channels ------------
    t2 = _pick_hw_tile(HW, bytes_per_lane=N * (2 * C + nC) * itemsize,
                       target_block_bytes=4 << 20)
    in_block2 = N * C * t2 * itemsize
    out_block2 = N * (C + nC) * t2 * itemsize
    x3 = x.reshape(N, C, HW)

    out3 = pl.pallas_call(
        _concat_kernel,
        grid=(HW // t2,),
        in_specs=[pl.BlockSpec((N, nC), lambda h: (0, 0)),
                  pl.BlockSpec((N, C, t2), lambda h: (0, 0, h))],
        out_specs=pl.BlockSpec((N, C + nC, t2), lambda h: (0, 0, h)),
        out_shape=jax.ShapeDtypeStruct((N, C + nC, HW), x.dtype),
        compiler_params=pltpu.CompilerParams(
            dimension_semantics=("parallel",),
            vmem_limit_bytes=_vmem_limit(in_block2, out_block2)),
        cost_estimate=pl.CostEstimate(
            flops=0,
            transcendentals=0,
            bytes_accessed=int(N * (2 * C + 2 * nC) * HW * itemsize)),
    )(stat_full, x3)

    return out3.reshape(N, C + nC, H, W)


# ---------------------------------------------------------------------------
# Plain-JAX transcription of the PyTorch forward (verification only)
# ---------------------------------------------------------------------------
def _reference(x, groups, new_channels, eps):
    N, C, H, W = x.shape
    G = min(groups, N)
    nC = new_channels
    c = C // nC
    y = x.reshape(G, -1, nC, c, H, W)
    y = y - y.mean(axis=0)
    y = (y * y).mean(axis=0)
    y = jnp.sqrt(y + eps)
    y = y.mean(axis=(2, 3, 4))
    y = y.reshape(-1, nC, 1, 1)
    y = jnp.tile(y, (G, 1, H, W))
    return jnp.concatenate((x, y), axis=1)


if __name__ == "__main__":
    key = jax.random.PRNGKey(0)
    k1, k2 = jax.random.split(key)

    # Case 1: module-scale smoke test (N=2, C=4, H=W=16).
    x1 = jax.random.normal(k1, (2, 4, 16, 16), dtype=jnp.float32)
    out1 = jax.block_until_ready(
        minibatch_std_layer(x1, groups=4, new_channels=2, eps=1e-8))
    ref1 = _reference(x1, 4, 2, 1e-8)
    assert out1.shape == ref1.shape == (2, 6, 16, 16)
    assert out1.dtype == x1.dtype
    assert jnp.allclose(out1, ref1, atol=1e-5, rtol=1e-5)

    # Case 2: exercises multi-tile HW accumulation and the parallel sub-batch axis.
    x2 = jax.random.normal(k2, (4, 8, 64, 64), dtype=jnp.float32)
    out2 = jax.block_until_ready(
        minibatch_std_layer(x2, groups=2, new_channels=4, eps=1e-8))
    ref2 = _reference(x2, 2, 4, 1e-8)
    assert out2.shape == ref2.shape == (4, 12, 64, 64)
    assert out2.dtype == x2.dtype
    assert jnp.allclose(out2, ref2, atol=1e-5, rtol=1e-5)

    print("KERNEL_OK")
</pallas_src>

<mosaic_0001>
module attributes {stable_mosaic.version = 11 : i64} {
  func.func @_stat_kernel(%arg0: i32, %arg1: i32, %arg2: memref<2x1x4x256xf32, #tpu.memory_space<vmem>>, %arg3: memref<1x1x4xf32, #tpu.memory_space<vmem>>, %arg4: memref<1x4xf32, #tpu.memory_space<vmem>>) attributes {dimension_semantics = [#tpu.dimension_semantics<parallel>, #tpu.dimension_semantics<arbitrary>], iteration_bounds = array<i64: 1, 1>, scalar_prefetch = 0 : i64, scratch_operands = 1 : i64, tpu.core_type = #tpu.core_type<tc>, window_params = [{transform_indices = @transform_0, window_bounds = array<i64: 2, 1, 4, 256>}, {transform_indices = @transform_1, window_bounds = array<i64: 1, 1, 4>}]} {
    %c0_i32 = arith.constant 0 : i32
    %0 = arith.cmpi eq, %arg1, %c0_i32 : i32
    %1 = arith.extui %0 : i1 to i32
    %c0_i32_0 = arith.constant 0 : i32
    %2 = arith.cmpi ne, %1, %c0_i32_0 : i32
    scf.if %2 {
      %cst_26 = arith.constant 0.000000e+00 : f32
      %35 = vector.broadcast %cst_26 : f32 to vector<1x4xf32>
      %c0_27 = arith.constant 0 : index
      %c0_28 = arith.constant 0 : index
      %36 = vector.load %arg4[%c0_27, %c0_28] : memref<1x4xf32, #tpu.memory_space<vmem>>, vector<1x4xf32>
      tpu.vector_store %arg4[%c0_27, %c0_28], %35 {strides = array<i32>} : memref<1x4xf32, #tpu.memory_space<vmem>>, vector<1x4xf32>,
    } else {
    }
    %cst = arith.constant 0.000000e+00 : f32
    %3 = vector.broadcast %cst : f32 to vector<1x4x256xf32>
    %c0 = arith.constant 0 : index
    %c0_1 = arith.constant 0 : index
    %c0_2 = arith.constant 0 : index
    %c0_3 = arith.constant 0 : index
    %4 = vector.load %arg2[%c0, %c0_1, %c0_2, %c0_3] : memref<2x1x4x256xf32, #tpu.memory_space<vmem>>, vector<1x1x4x256xf32>
    %5 = vector.shape_cast %4 : vector<1x1x4x256xf32> to vector<1x4x256xf32>
    %6 = arith.addf %3, %5 : vector<1x4x256xf32>
    %c1 = arith.constant 1 : index
    %c0_4 = arith.constant 0 : index
    %c0_5 = arith.constant 0 : index
    %c0_6 = arith.constant 0 : index
    %7 = vector.load %arg2[%c1, %c0_4, %c0_5, %c0_6] : memref<2x1x4x256xf32, #tpu.memory_space<vmem>>, vector<1x1x4x256xf32>
    %8 = vector.shape_cast %7 : vector<1x1x4x256xf32> to vector<1x4x256xf32>
    %9 = arith.addf %6, %8 : vector<1x4x256xf32>
    %cst_7 = arith.constant 5.000000e-01 : f32
    %10 = vector.broadcast %cst_7 : f32 to vector<1x4x256xf32>
    %11 = arith.mulf %9, %10 : vector<1x4x256xf32>
    %cst_8 = arith.constant 0.000000e+00 : f32
    %12 = vector.broadcast %cst_8 : f32 to vector<1x4x256xf32>
    %c0_9 = arith.constant 0 : index
    %c0_10 = arith.constant 0 : index
    %c0_11 = arith.constant 0 : index
    %c0_12 = arith.constant 0 : index
    %13 = vector.load %arg2[%c0_9, %c0_10, %c0_11, %c0_12] : memref<2x1x4x256xf32, #tpu.memory_space<vmem>>, vector<1x1x4x256xf32>
    %14 = vector.shape_cast %13 : vector<1x1x4x256xf32> to vector<1x4x256xf32>
    %15 = arith.subf %14, %11 : vector<1x4x256xf32>
    %16 = arith.mulf %15, %15 : vector<1x4x256xf32>
    %17 = arith.addf %12, %16 : vector<1x4x256xf32>
    %c1_13 = arith.constant 1 : index
    %c0_14 = arith.constant 0 : index
    %c0_15 = arith.constant 0 : index
    %c0_16 = arith.constant 0 : index
    %18 = vector.load %arg2[%c1_13, %c0_14, %c0_15, %c0_16] : memref<2x1x4x256xf32, #tpu.memory_space<vmem>>, vector<1x1x4x256xf32>
    %19 = vector.shape_cast %18 : vector<1x1x4x256xf32> to vector<1x4x256xf32>
    %20 = arith.subf %19, %11 : vector<1x4x256xf32>
    %21 = arith.mulf %20, %20 : vector<1x4x256xf32>
    %22 = arith.addf %17, %21 : vector<1x4x256xf32>
    %cst_17 = arith.constant 5.000000e-01 : f32
    %23 = vector.broadcast %cst_17 : f32 to vector<1x4x256xf32>
    %24 = arith.mulf %22, %23 : vector<1x4x256xf32>
    %cst_18 = arith.constant 9.99999993E-9 : f32
    %25 = vector.broadcast %cst_18 : f32 to vector<1x4x256xf32>
    %26 = arith.addf %24, %25 : vector<1x4x256xf32>
    %27 = math.sqrt %26 : vector<1x4x256xf32>
    %c0_19 = arith.constant 0 : index
    %c0_20 = arith.constant 0 : index
    %28 = vector.load %arg4[%c0_19, %c0_20] : memref<1x4xf32, #tpu.memory_space<vmem>>, vector<1x4xf32>
    %cst_21 = arith.constant dense<0.000000e+00> : vector<1x4xf32>
    %29 = vector.multi_reduction <add>, %27, %cst_21 [2] : vector<1x4x256xf32> to vector<1x4xf32>
    %30 = arith.addf %28, %29 : vector<1x4xf32>
    %c0_22 = arith.constant 0 : index
    %c0_23 = arith.constant 0 : index
    %31 = vector.load %arg4[%c0_22, %c0_23] : memref<1x4xf32, #tpu.memory_space<vmem>>, vector<1x4xf32>
    tpu.vector_store %arg4[%c0_22, %c0_23], %30 {strides = array<i32>} : memref<1x4xf32, #tpu.memory_space<vmem>>, vector<1x4xf32>,
    %c0_i32_24 = arith.constant 0 : i32
    %32 = arith.cmpi eq, %arg1, %c0_i32_24 : i32
    %33 = arith.extui %32 : i1 to i32
    %c0_i32_25 = arith.constant 0 : i32
    %34 = arith.cmpi ne, %33, %c0_i32_25 : i32
    scf.if %34 {
      %c0_26 = arith.constant 0 : index
      %c0_27 = arith.constant 0 : index
      %35 = vector.load %arg4[%c0_26, %c0_27] : memref<1x4xf32, #tpu.memory_space<vmem>>, vector<1x4xf32>
      %cst_28 = arith.constant 3.906250e-03 : f32
      %36 = vector.broadcast %cst_28 : f32 to vector<1x4xf32>
      %37 = arith.mulf %35, %36 : vector<1x4xf32>
      %38 = vector.shape_cast %37 : vector<1x4xf32> to vector<1x1x4xf32>
      %c0_29 = arith.constant 0 : index
      %c0_30 = arith.constant 0 : index
      %c0_31 = arith.constant 0 : index
      %39 = vector.load %arg3[%c0_29, %c0_30, %c0_31] : memref<1x1x4xf32, #tpu.memory_space<vmem>>, vector<1x1x4xf32>
      tpu.vector_store %arg3[%c0_29, %c0_30, %c0_31], %38 {strides = array<i32>} : memref<1x1x4xf32, #tpu.memory_space<vmem>>, vector<1x1x4xf32>,
    } else {
    }
    return
  }
  func.func @transform_0(%arg0: i32, %arg1: i32) -> (i32, i32, i32, i32) {
    %c0_i32 = arith.constant 0 : i32
    %c0_i32_0 = arith.constant 0 : i32
    %c0_i32_1 = arith.constant 0 : i32
    return %c0_i32, %arg0, %c0_i32_0, %arg1 : i32, i32, i32, i32
  }
  func.func @transform_1(%arg0: i32, %arg1: i32) -> (i32, i32, i32) {
    %c0_i32 = arith.constant 0 : i32
    %c0_i32_0 = arith.constant 0 : i32
    %c0_i32_1 = arith.constant 0 : i32
    return %arg0, %c0_i32, %c0_i32_0 : i32, i32, i32
  }
}

</mosaic_0001>

<llo_original>
// kernel: tpu_custom_call.1
$region0: #{tpu_custom_call.1}
  #allocation0 [shape = 'u32[]', space=smem, size = 0x4, offset = 0x4, fixed_abs, tag = 'smem constant byte address 0x4 - core index']
  #allocation1 [shape = 'u32[72,128]{1,0:T(1,128)}', space=vmem, size = 0x9000, scoped, tag = 'internal scratch']
  #allocation2 [shape = 'f32[1,4]{1,0:T(1,128)}', space=vmem, size = 0x200, scoped, tag = 'scratch operand']
  %s0 = inlined_call_operand.hbm [shape: f32[2,1,4,256], index: 0, kind: input, shape index: {}]
  %s1 = inlined_call_operand.hbm [shape: f32[1,1,4], index: 1, kind: output, shape index: {}]
  %s2 = sld [smem:[#allocation0]]
  $region26: #{tpu_custom_call.1} parent=0
    _
  %s4 = ssub.s32 1, %s2
  %s5 = scalar_select 0, %s4, %s2
  $region1: #{tpu_custom_call.1} parent=0
    #allocation3 [shape = 'u8[8192]{0}', space=vmem, size = 0x2000, scoped, tag = 'input window, operand 0, single buffered']
    #allocation4 [shape = 's32[1]{0}', space=sflag, size = 0x4, scoped, tag = 'scoped memory for tpu_custom_call.1']
    #allocation5 [shape = 's32[1]{0}', space=sflag, size = 0x4, scoped, tag = 'scoped memory for tpu_custom_call.1']
    #allocation6 [shape = 'u8[512]{0}', space=vmem, size = 0x400, scoped, tag = 'output window, operand 0, single buffered']
    %6 = vsyncpa [#allocation4], 0
    %7 = vsyncpa [#allocation5], 0
    // Predicated region
    $region2: #{tpu_custom_call.1} parent=1 // pred_check
      _
    $region3: #{tpu_custom_call.1} parent=1 // pred_check_branch
      %9 = sbr.rel (0) target = $region5
    $region4: #{tpu_custom_call.1} parent=1 // pred_region
      %11 = vsyncadd [#allocation4], 0
      %s12 = sshll.u32 %s0, 4
      %s13 = int_to_ptr.hbm [resolvable:$true] %s12
      %s14 = sshll.u32 [#allocation3], 4
      %s15 = int_to_ptr.vmem [resolvable:$true] %s14
      %20 = dma.hbm_to_vmem [thread:$0]  %s13, 256, %s15, [#allocation4], 128, 128, 8
    $region5: #{tpu_custom_call.1} parent=1 // pred_fallthru
      _
    // Predicated region
    $region6: #{tpu_custom_call.1} parent=1 // pred_check
      _
    $region7: #{tpu_custom_call.1} parent=1 // pred_check_branch
      %22 = sbr.rel (0) target = $region9
    $region8: #{tpu_custom_call.1} parent=1 // pred_region
      %24 = dma.done [#allocation4], 256
    $region9: #{tpu_custom_call.1} parent=1 // pred_fallthru
      _
    %p25 = scmp.eq.s32.totalorder 0, 0
    // Predicated region
    $region10: #{tpu_custom_call.1} parent=1 // pred_check
      %p26 = pneg %p25
    $region11: #{tpu_custom_call.1} parent=1 // pred_check_branch
      %28 = sbr.rel (%p26) target = $region13
    $region12: #{tpu_custom_call.1} parent=1 // pred_region
      %vm29 = vcmask 24576
      %30 = vst.msk [vmem:[#allocation2] sm:$0x1] %vm29, 0.0
    $region13: #{tpu_custom_call.1} parent=1 // pred_fallthru
      _
    %v31 = vld [vmem:[#allocation3] sm:$0xff]
    %v32 = vadd.f32 %v31, 0.0
    %s33 = scalar_lea.vmem [#allocation3], 8
    %v34 = vld [vmem:[%s33] sm:$0xff]
    %v35 = vadd.f32 %v32, %v34
    %v36 = vmul.f32 %v35, 0.5
    %v37 = vsub.f32 %v31, %v36
    %v38 = vmul.f32 %v37, %v37
    %v39 = vadd.f32 %v38, 0.0
    %v40 = vsub.f32 %v34, %v36
    %v41 = vmul.f32 %v40, %v40
    %v42 = vadd.f32 %v39, %v41
    %v43 = vmul.f32 %v42, 0.5
    %v44 = vadd.f32 %v43, 1e-08
    %v45 = vrsqrt.pop %v44
    %v46 = vmul.f32 %v45, %v44
    %v47 = vmul.f32 %v46, %v45
    %v48 = vmul.f32 0.5, %v47
    %v49 = vsub.f32 1.5, %v48
    %v50 = vmul.f32 %v45, %v49
    %v51 = vmul.f32 %v44, %v50
    %vm52 = vcmp.eq.f32.partialorder %v44, inf
    %v53 = vsel %vm52, %v44, %v51
    %vm54 = vcmp.eq.f32.partialorder %v44, 0.0
    %v55 = vand.u32 %v44, 2147483648
    %v56 = vsel %vm54, %v55, %v53
    %v57 = vld [vmem:[#allocation2] sm:$0x1]
    %59 = vst [vmem:[#allocation1] ss:$2 sm:$0xff] %v56
    %v60 = vld.sshfl [vmem:[#allocation1] sm:$0xff pattern:$0x75316420]
    %v61 = vld.sshfl [vmem:[#allocation1 + $0x8] sm:$0xff pattern:$0x75316420]
    %vm64 = vcmask 1043456
    %v65 = vsel %vm64, %v60, 0.0
    %v66 = vsel %vm64, %v61, 0.0
    %v67 = vadd.f32 %v65, %v66
    %68 = vadd.xlane.f32.xlu0 %v67
    %v69 = vpop.xlane.xlu0 %68
    %v71 = vperm.slane %v69, 0
    %v72 = vperm.slane %v69, 1
    %v73 = vperm.slane %v69, 2
    %v74 = vperm.slane %v69, 3
    %75 = vst [vmem:[#allocation1] ss:$9 sm:$0xff] %v71
    %s76 = scalar_lea.vmem [#allocation1], 1
    %77 = vst [vmem:[%s76] ss:$9 sm:$0xff] %v72
    %s78 = scalar_lea.vmem [#allocation1], 2
    %79 = vst [vmem:[%s78] ss:$9 sm:$0xff] %v73
    %s80 = scalar_lea.vmem [#allocation1], 3
    %81 = vst [vmem:[%s80] ss:$9 sm:$0xff] %v74
    %v82 = vld [vmem:[#allocation1] sm:$0xff]
    %83 = vset.pattern.permute.xlu0 0
    %84 = vperm.xlu0 %83, %v82
    %v85 = vpop.permute.xlu0 %84
    %v86 = vlaneseq
    %v87 = vand.u32 %v86, 127
    %v88 = vperm.slane %v85, %v87
    %v90 = vadd.f32 %v57, %v88
    %vm91 = vcmask 24576
    %92 = vst.msk [vmem:[#allocation2] sm:$0x1] %vm91, %v90
    // Predicated region
    $region14: #{tpu_custom_call.1} parent=1 // pred_check
      %p93 = pneg %p25
    $region15: #{tpu_custom_call.1} parent=1 // pred_check_branch
      %95 = sbr.rel (%p93) target = $region17
    $region16: #{tpu_custom_call.1} parent=1 // pred_region
      %v96 = vld [vmem:[#allocation2] sm:$0x1]
      %v97 = vmul.f32 %v96, 0.00390625
      %98 = vst.msk [vmem:[#allocation6] sm:$0x1] %vm91, %v97
    $region17: #{tpu_custom_call.1} parent=1 // pred_fallthru
      _
    // Predicated region
    $region18: #{tpu_custom_call.1} parent=1 // pred_check
      _
    $region19: #{tpu_custom_call.1} parent=1 // pred_check_branch
      %100 = sbr.rel (0) target = $region21
    $region20: #{tpu_custom_call.1} parent=1 // pred_region
      %102 = vsyncadd [#allocation5], 0
      %s104 = sshll.u32 [#allocation6], 4
      %s105 = int_to_ptr.vmem [resolvable:$true] %s104
      %s106 = sshll.u32 %s1, 4
      %s107 = int_to_ptr.hbm [resolvable:$true] %s106
      %109 = dma.vmem_to_hbm [thread:$0]  %s105, 16, %s107, [#allocation5]
    $region21: #{tpu_custom_call.1} parent=1 // pred_fallthru
      _
    // Predicated region
    $region22: #{tpu_custom_call.1} parent=1 // pred_check
      _
    $region23: #{tpu_custom_call.1} parent=1 // pred_check_branch
      %111 = sbr.rel (0) target = $region25
    $region24: #{tpu_custom_call.1} parent=1 // pred_region
      %113 = dma.done [#allocation5], 16
    $region25: #{tpu_custom_call.1} parent=1 // pred_fallthru
      _
    %114 = vsyncpa [#allocation4], 1
    %115 = vsyncpa [#allocation5], 1

</llo_original>
